<compile_context>
chip_gen: v5e
topology: v5e:2x2
jax: 0.10.0
libtpu: 0.0.40
codegen_flags: <defaults>
</compile_context>

<pallas_src>
from functools import partial

import jax
import jax.numpy as jnp
from jax.experimental import pallas as pl
from jax.experimental.pallas import tpu as pltpu


# ----------------------------------------------------------------------------
# Pallas kernel: N_tile batch elements per grid step, fully fused SE block
# ----------------------------------------------------------------------------
def _se_kernel(x_ref, w1t_ref, b1_ref, w2t_ref, b2_ref, o_ref, *, inv_s):
    # Global average pool over the flattened spatial (lane) axis.  Read the
    # ref, reduce, and let the full slab die immediately: nothing (Nt, C, S)
    # sized stays live in vregs across the FC chain.
    pooled = jnp.sum(x_ref[...], axis=-1, dtype=jnp.float32) * inv_s   # (Nt, C)

    # fc1 (1x1x1 conv) + ReLU : (Nt, C) @ (C, C_sq) -> (Nt, C_sq)
    h = jnp.dot(pooled, w1t_ref[...],
                preferred_element_type=jnp.float32) + b1_ref[...]
    h = jnp.maximum(h, 0.0)

    # fc2 (1x1x1 conv) + sigmoid : (Nt, C_sq) @ (C_sq, C) -> (Nt, C)
    s = jnp.dot(h, w2t_ref[...],
                preferred_element_type=jnp.float32) + b2_ref[...]
    s = jax.nn.sigmoid(s).astype(o_ref.dtype)                          # (Nt, C)

    # Re-read x from VMEM (rides the vld slots, hidden under the DMA-bound
    # pipeline) and do the lane-dense per-channel rescale in native dtype.
    o_ref[...] = x_ref[...] * s[:, :, None]


# ----------------------------------------------------------------------------
# Grid sizing heuristics
# ----------------------------------------------------------------------------
def _dual_tensorcore():
    """True on chips with 2 TensorCores sharing the grid (v7x)."""
    try:
        kind = jax.devices()[0].device_kind.lower()
    except Exception:
        return False
    return ("v7" in kind) or ("7x" in kind)


def _pick_n_tile(N, C, S, dtype):
    blk_bytes = C * S * jnp.dtype(dtype).itemsize
    # input + output, double-buffered -> ~4 copies of one batch row resident.
    vmem_budget = 12 << 20            # fits every chip's scoped-VMEM default
    max_tile = max(1, vmem_budget // (4 * blk_bytes))
    steps_wanted = 2 if (_dual_tensorcore() and N >= 2) else 1
    n_tile = min(max_tile, max(1, pl.cdiv(N, steps_wanted)))
    while N % n_tile:                 # keep blocks exact (no padded batch rows)
        n_tile -= 1
    return n_tile


# ----------------------------------------------------------------------------
# Wrapper: NCDHW in / NCDHW out (reshape only, no transpose of activations)
# ----------------------------------------------------------------------------
def squeeze_excitation(x_ncdhw, w1, b1, w2, b2):
    """x: (N, C, D, H, W) any float dtype; w1: (C_sq, C); b1: (C_sq,);
    w2: (C, C_sq); b2: (C,).  Returns same shape/dtype as x."""
    N, C, D, H, W = x_ncdhw.shape
    S = D * H * W
    C_sq = w1.shape[0]

    x = x_ncdhw.reshape(N, C, S)                      # native dtype preserved
    w1t = jnp.transpose(w1).astype(jnp.float32)       # (C, C_sq)
    b1r = b1.reshape(1, C_sq).astype(jnp.float32)
    w2t = jnp.transpose(w2).astype(jnp.float32)       # (C_sq, C)
    b2r = b2.reshape(1, C).astype(jnp.float32)

    n_tile = _pick_n_tile(N, C, S, x.dtype)
    grid = (N // n_tile,)

    kernel = partial(_se_kernel, inv_s=1.0 / S)
    out = pl.pallas_call(
        kernel,
        out_shape=jax.ShapeDtypeStruct((N, C, S), x.dtype),
        grid_spec=pltpu.PrefetchScalarGridSpec(
            num_scalar_prefetch=0,
            grid=grid,
            in_specs=[
                pl.BlockSpec((n_tile, C, S), lambda n: (n, 0, 0)),   # activations
                pl.BlockSpec((C, C_sq), lambda n: (0, 0)),           # fc1 weight^T
                pl.BlockSpec((1, C_sq), lambda n: (0, 0)),           # fc1 bias
                pl.BlockSpec((C_sq, C), lambda n: (0, 0)),           # fc2 weight^T
                pl.BlockSpec((1, C), lambda n: (0, 0)),              # fc2 bias
            ],
            out_specs=pl.BlockSpec((n_tile, C, S), lambda n: (n, 0, 0)),
        ),
        compiler_params=pltpu.CompilerParams(
            dimension_semantics=("parallel",)),
    )(x, w1t, b1r, w2t, b2r)

    return out.reshape(N, C, D, H, W)


# ----------------------------------------------------------------------------
# Deterministic parameter construction (mirrors Conv3d 1x1x1 squeezed params)
# ----------------------------------------------------------------------------
def make_params(key, C, C_sq):
    k1, k2, k3, k4 = jax.random.split(key, 4)
    w1 = 0.2 * jax.random.normal(k1, (C_sq, C), jnp.float32)   # fc1 weight
    b1 = 0.1 * jax.random.normal(k2, (C_sq,), jnp.float32)     # fc1 bias
    w2 = 0.2 * jax.random.normal(k3, (C, C_sq), jnp.float32)   # fc2 weight
    b2 = 0.1 * jax.random.normal(k4, (C,), jnp.float32)        # fc2 bias
    return w1, b1, w2, b2


# ----------------------------------------------------------------------------
# Pure-JAX reference for verification
# ----------------------------------------------------------------------------
def reference(x, w1, b1, w2, b2):
    pooled = jnp.mean(x, axis=(2, 3, 4))                       # (N, C)
    h = jnp.maximum(pooled @ w1.T + b1, 0.0)                   # (N, C_sq)
    s = jax.nn.sigmoid(h @ w2.T + b2)                          # (N, C)
    return x * s[:, :, None, None, None]


if __name__ == "__main__":
    # SqueezeExcitation(input_channels=32, squeeze_channels=8) on a 3D volume
    N, C, C_sq = 2, 32, 8
    D = H = W = 8

    key = jax.random.PRNGKey(0)
    kx, kp = jax.random.split(key)
    x = jax.random.normal(kx, (N, C, D, H, W), jnp.float32)    # NCDHW input
    params = make_params(kp, C, C_sq)

    # f32 path
    out = jax.block_until_ready(squeeze_excitation(x, *params))
    ref = jax.block_until_ready(reference(x, *params))
    assert out.shape == (N, C, D, H, W) and out.dtype == x.dtype
    assert jnp.allclose(out, ref, atol=1e-4, rtol=1e-4), (
        float(jnp.max(jnp.abs(out - ref))))

    # bf16 streaming path (native activation dtype preserved end-to-end)
    x_bf = x.astype(jnp.bfloat16)
    out_bf = jax.block_until_ready(squeeze_excitation(x_bf, *params))
    ref_bf = reference(x_bf.astype(jnp.float32), *params)
    assert out_bf.dtype == jnp.bfloat16
    assert jnp.allclose(out_bf.astype(jnp.float32), ref_bf,
                        atol=5e-2, rtol=5e-2), (
        float(jnp.max(jnp.abs(out_bf.astype(jnp.float32) - ref_bf))))

    print("KERNEL_OK")
</pallas_src>

<mosaic_0001>
module attributes {stable_mosaic.version = 11 : i64} {
  func.func @_se_kernel(%arg0: i32, %arg1: memref<2x32x512xf32, #tpu.memory_space<vmem>>, %arg2: memref<32x8xf32, #tpu.memory_space<vmem>>, %arg3: memref<1x8xf32, #tpu.memory_space<vmem>>, %arg4: memref<8x32xf32, #tpu.memory_space<vmem>>, %arg5: memref<1x32xf32, #tpu.memory_space<vmem>>, %arg6: memref<2x32x512xf32, #tpu.memory_space<vmem>>) attributes {dimension_semantics = [#tpu.dimension_semantics<parallel>], iteration_bounds = array<i64: 1>, scalar_prefetch = 0 : i64, scratch_operands = 0 : i64, tpu.core_type = #tpu.core_type<tc>, window_params = [{transform_indices = @transform_0, window_bounds = array<i64: 2, 32, 512>}, {pipeline_mode = #tpu.pipeline_mode<synchronous>, transform_indices = @transform_1, window_bounds = array<i64: 32, 8>}, {pipeline_mode = #tpu.pipeline_mode<synchronous>, transform_indices = @transform_2, window_bounds = array<i64: 1, 8>}, {pipeline_mode = #tpu.pipeline_mode<synchronous>, transform_indices = @transform_3, window_bounds = array<i64: 8, 32>}, {pipeline_mode = #tpu.pipeline_mode<synchronous>, transform_indices = @transform_4, window_bounds = array<i64: 1, 32>}, {transform_indices = @transform_5, window_bounds = array<i64: 2, 32, 512>}]} {
    %c0 = arith.constant 0 : index
    %c0_0 = arith.constant 0 : index
    %c0_1 = arith.constant 0 : index
    %0 = vector.load %arg1[%c0, %c0_0, %c0_1] : memref<2x32x512xf32, #tpu.memory_space<vmem>>, vector<2x32x512xf32>
    %cst = arith.constant dense<0.000000e+00> : vector<2x32xf32>
    %1 = vector.multi_reduction <add>, %0, %cst [2] : vector<2x32x512xf32> to vector<2x32xf32>
    %cst_2 = arith.constant 0.001953125 : f32
    %2 = vector.broadcast %cst_2 : f32 to vector<2x32xf32>
    %3 = arith.mulf %1, %2 : vector<2x32xf32>
    %c0_3 = arith.constant 0 : index
    %c0_4 = arith.constant 0 : index
    %4 = vector.load %arg2[%c0_3, %c0_4] : memref<32x8xf32, #tpu.memory_space<vmem>>, vector<32x8xf32>
    %cst_5 = arith.constant dense<0.000000e+00> : vector<2x8xf32>
    %5 = tpu.matmul %3, %4, %cst_5 {dimension_numbers = #tpu.dot_dimension_numbers<[1], [0], [0], [1], [0, 0, 1, 1], [], []>} : vector<2x32xf32>, vector<32x8xf32>, vector<2x8xf32> -> vector<2x8xf32>
    %c0_6 = arith.constant 0 : index
    %c0_7 = arith.constant 0 : index
    %6 = vector.load %arg3[%c0_6, %c0_7] : memref<1x8xf32, #tpu.memory_space<vmem>>, vector<1x8xf32>
    %7 = vector.broadcast %6 : vector<1x8xf32> to vector<2x8xf32>
    %8 = arith.addf %5, %7 : vector<2x8xf32>
    %cst_8 = arith.constant 0.000000e+00 : f32
    %9 = vector.broadcast %cst_8 : f32 to vector<2x8xf32>
    %10 = arith.maximumf %8, %9 : vector<2x8xf32>
    %c0_9 = arith.constant 0 : index
    %c0_10 = arith.constant 0 : index
    %11 = vector.load %arg4[%c0_9, %c0_10] : memref<8x32xf32, #tpu.memory_space<vmem>>, vector<8x32xf32>
    %cst_11 = arith.constant dense<0.000000e+00> : vector<2x32xf32>
    %12 = tpu.matmul %10, %11, %cst_11 {dimension_numbers = #tpu.dot_dimension_numbers<[1], [0], [0], [1], [0, 0, 1, 1], [], []>} : vector<2x8xf32>, vector<8x32xf32>, vector<2x32xf32> -> vector<2x32xf32>
    %c0_12 = arith.constant 0 : index
    %c0_13 = arith.constant 0 : index
    %13 = vector.load %arg5[%c0_12, %c0_13] : memref<1x32xf32, #tpu.memory_space<vmem>>, vector<1x32xf32>
    %14 = vector.broadcast %13 : vector<1x32xf32> to vector<2x32xf32>
    %15 = arith.addf %12, %14 : vector<2x32xf32>
    %16 = arith.negf %15 : vector<2x32xf32>
    %17 = math.exp %16 : vector<2x32xf32>
    %cst_14 = arith.constant 1.000000e+00 : f32
    %18 = vector.broadcast %cst_14 : f32 to vector<2x32xf32>
    %19 = arith.addf %18, %17 : vector<2x32xf32>
    %20 = arith.divf %18, %19 : vector<2x32xf32>
    %c0_15 = arith.constant 0 : index
    %c0_16 = arith.constant 0 : index
    %c0_17 = arith.constant 0 : index
    %21 = vector.load %arg1[%c0_15, %c0_16, %c0_17] : memref<2x32x512xf32, #tpu.memory_space<vmem>>, vector<2x32x512xf32>
    %22 = vector.shape_cast %20 : vector<2x32xf32> to vector<2x32x1xf32>
    %23 = vector.broadcast %22 : vector<2x32x1xf32> to vector<2x32x512xf32>
    %24 = arith.mulf %21, %23 : vector<2x32x512xf32>
    %c0_18 = arith.constant 0 : index
    %c0_19 = arith.constant 0 : index
    %c0_20 = arith.constant 0 : index
    %25 = vector.load %arg6[%c0_18, %c0_19, %c0_20] : memref<2x32x512xf32, #tpu.memory_space<vmem>>, vector<2x32x512xf32>
    tpu.vector_store %arg6[%c0_18, %c0_19, %c0_20], %24 {strides = array<i32>} : memref<2x32x512xf32, #tpu.memory_space<vmem>>, vector<2x32x512xf32>,
    return
  }
  func.func @transform_0(%arg0: i32) -> (i32, i32, i32) {
    %c0_i32 = arith.constant 0 : i32
    %c0_i32_0 = arith.constant 0 : i32
    %c0_i32_1 = arith.constant 0 : i32
    return %arg0, %c0_i32, %c0_i32_0 : i32, i32, i32
  }
  func.func @transform_1(%arg0: i32) -> (i32, i32) {
    %c0_i32 = arith.constant 0 : i32
    %c0_i32_0 = arith.constant 0 : i32
    %c0_i32_1 = arith.constant 0 : i32
    return %c0_i32, %c0_i32_0 : i32, i32
  }
  func.func @transform_2(%arg0: i32) -> (i32, i32) {
    %c0_i32 = arith.constant 0 : i32
    %c0_i32_0 = arith.constant 0 : i32
    %c0_i32_1 = arith.constant 0 : i32
    return %c0_i32, %c0_i32_0 : i32, i32
  }
  func.func @transform_3(%arg0: i32) -> (i32, i32) {
    %c0_i32 = arith.constant 0 : i32
    %c0_i32_0 = arith.constant 0 : i32
    %c0_i32_1 = arith.constant 0 : i32
    return %c0_i32, %c0_i32_0 : i32, i32
  }
  func.func @transform_4(%arg0: i32) -> (i32, i32) {
    %c0_i32 = arith.constant 0 : i32
    %c0_i32_0 = arith.constant 0 : i32
    %c0_i32_1 = arith.constant 0 : i32
    return %c0_i32, %c0_i32_0 : i32, i32
  }
  func.func @transform_5(%arg0: i32) -> (i32, i32, i32) {
    %c0_i32 = arith.constant 0 : i32
    %c0_i32_0 = arith.constant 0 : i32
    %c0_i32_1 = arith.constant 0 : i32
    return %arg0, %c0_i32, %c0_i32_0 : i32, i32, i32
  }
}

</mosaic_0001>

<llo_original>
// kernel: tpu_custom_call.1
$region0: #{tpu_custom_call.1}
  #allocation0 [shape = 'u32[]', space=smem, size = 0x4, offset = 0x4, fixed_abs, tag = 'smem constant byte address 0x4 - core index']
  #allocation1 [shape = 'u32[72,128]{1,0:T(1,128)}', space=vmem, size = 0x9000, scoped, tag = 'internal scratch']
  %s0 = inlined_call_operand.hbm [shape: f32[2,32,512], index: 0, kind: input, shape index: {}]
  %s1 = inlined_call_operand.vmem [shape: f32[32,8], index: 1, kind: input, shape index: {}]
  %s2 = inlined_call_operand.vmem [shape: f32[1,8], index: 2, kind: input, shape index: {}]
  %s3 = inlined_call_operand.vmem [shape: f32[8,32], index: 3, kind: input, shape index: {}]
  %s4 = inlined_call_operand.vmem [shape: f32[1,32], index: 4, kind: input, shape index: {}]
  %s5 = inlined_call_operand.hbm [shape: f32[2,32,512], index: 5, kind: output, shape index: {}]
  %s6 = sld [smem:[#allocation0]]
  $region34: #{tpu_custom_call.1} parent=0
    _
  %s8 = ssub.s32 1, %s6
  %s9 = scalar_select 0, %s8, %s6
  $region1: #{tpu_custom_call.1} parent=0
    #allocation2 [shape = 'u8[131072]{0}', space=vmem, size = 0x20000, scoped, tag = 'input window, operand 0, single buffered']
    #allocation3 [shape = 's32[1]{0}', space=sflag, size = 0x4, scoped, tag = 'scoped memory for tpu_custom_call.1']
    #allocation4 [shape = 's32[1]{0}', space=sflag, size = 0x4, scoped, tag = 'scoped memory for tpu_custom_call.1']
    #allocation5 [shape = 'u8[131072]{0}', space=vmem, size = 0x20000, scoped, tag = 'output window, operand 0, single buffered']
    %10 = vsyncpa [#allocation3], 0
    %11 = vsyncpa [#allocation4], 0
    // Predicated region
    $region2: #{tpu_custom_call.1} parent=1 // pred_check
      _
    $region3: #{tpu_custom_call.1} parent=1 // pred_check_branch
      %13 = sbr.rel (0) target = $region5
    $region4: #{tpu_custom_call.1} parent=1 // pred_region
      %15 = vsyncadd [#allocation3], 0
      %s16 = sshll.u32 %s0, 4
      %s17 = int_to_ptr.hbm [resolvable:$true] %s16
      %s18 = sshll.u32 [#allocation2], 4
      %s19 = int_to_ptr.vmem [resolvable:$true] %s18
      %24 = dma.hbm_to_vmem [thread:$0]  %s17, 4096, %s19, [#allocation3], 512, 512, 32
    $region5: #{tpu_custom_call.1} parent=1 // pred_fallthru
      _
    // Predicated region
    $region6: #{tpu_custom_call.1} parent=1 // pred_check
      _
    $region7: #{tpu_custom_call.1} parent=1 // pred_check_branch
      %26 = sbr.rel (0) target = $region9
    $region8: #{tpu_custom_call.1} parent=1 // pred_region
      _
    $region9: #{tpu_custom_call.1} parent=1 // pred_fallthru
      _
    // Predicated region
    $region10: #{tpu_custom_call.1} parent=1 // pred_check
      _
    $region11: #{tpu_custom_call.1} parent=1 // pred_check_branch
      %28 = sbr.rel (0) target = $region13
    $region12: #{tpu_custom_call.1} parent=1 // pred_region
      _
    $region13: #{tpu_custom_call.1} parent=1 // pred_fallthru
      _
    // Predicated region
    $region14: #{tpu_custom_call.1} parent=1 // pred_check
      _
    $region15: #{tpu_custom_call.1} parent=1 // pred_check_branch
      %30 = sbr.rel (0) target = $region17
    $region16: #{tpu_custom_call.1} parent=1 // pred_region
      _
    $region17: #{tpu_custom_call.1} parent=1 // pred_fallthru
      _
    // Predicated region
    $region18: #{tpu_custom_call.1} parent=1 // pred_check
      _
    $region19: #{tpu_custom_call.1} parent=1 // pred_check_branch
      %32 = sbr.rel (0) target = $region21
    $region20: #{tpu_custom_call.1} parent=1 // pred_region
      _
    $region21: #{tpu_custom_call.1} parent=1 // pred_fallthru
      _
    // Predicated region
    $region22: #{tpu_custom_call.1} parent=1 // pred_check
      _
    $region23: #{tpu_custom_call.1} parent=1 // pred_check_branch
      %34 = sbr.rel (0) target = $region25
    $region24: #{tpu_custom_call.1} parent=1 // pred_region
      %36 = dma.done [#allocation3], 4096
    $region25: #{tpu_custom_call.1} parent=1 // pred_fallthru
      _
    %v37 = vld [vmem:[#allocation2] sm:$0xff]
    %v38 = vld [vmem:[#allocation2 + $0x8] sm:$0xff]
    %v39 = vld [vmem:[#allocation2 + $0x10] sm:$0xff]
    %v40 = vld [vmem:[#allocation2 + $0x18] sm:$0xff]
    %v41 = vld [vmem:[#allocation2 + $0x20] sm:$0xff]
    %v42 = vld [vmem:[#allocation2 + $0x28] sm:$0xff]
    %v43 = vld [vmem:[#allocation2 + $0x30] sm:$0xff]
    %v44 = vld [vmem:[#allocation2 + $0x38] sm:$0xff]
    %v45 = vld [vmem:[#allocation2 + $0x40] sm:$0xff]
    %v46 = vld [vmem:[#allocation2 + $0x48] sm:$0xff]
    %v47 = vld [vmem:[#allocation2 + $0x50] sm:$0xff]
    %v48 = vld [vmem:[#allocation2 + $0x58] sm:$0xff]
    %v49 = vld [vmem:[#allocation2 + $0x60] sm:$0xff]
    %v50 = vld [vmem:[#allocation2 + $0x68] sm:$0xff]
    %v51 = vld [vmem:[#allocation2 + $0x70] sm:$0xff]
    %v52 = vld [vmem:[#allocation2 + $0x78] sm:$0xff]
    %v53 = vld [vmem:[#allocation2 + $0x80] sm:$0xff]
    %v54 = vld [vmem:[#allocation2 + $0x88] sm:$0xff]
    %v55 = vld [vmem:[#allocation2 + $0x90] sm:$0xff]
    %v56 = vld [vmem:[#allocation2 + $0x98] sm:$0xff]
    %v57 = vld [vmem:[#allocation2 + $0xa0] sm:$0xff]
    %v58 = vld [vmem:[#allocation2 + $0xa8] sm:$0xff]
    %v59 = vld [vmem:[#allocation2 + $0xb0] sm:$0xff]
    %v60 = vld [vmem:[#allocation2 + $0xb8] sm:$0xff]
    %v61 = vld [vmem:[#allocation2 + $0xc0] sm:$0xff]
    %v62 = vld [vmem:[#allocation2 + $0xc8] sm:$0xff]
    %v63 = vld [vmem:[#allocation2 + $0xd0] sm:$0xff]
    %v64 = vld [vmem:[#allocation2 + $0xd8] sm:$0xff]
    %v65 = vld [vmem:[#allocation2 + $0xe0] sm:$0xff]
    %v66 = vld [vmem:[#allocation2 + $0xe8] sm:$0xff]
    %v67 = vld [vmem:[#allocation2 + $0xf0] sm:$0xff]
    %v68 = vld [vmem:[#allocation2 + $0xf8] sm:$0xff]
    %v69 = vadd.f32 %v37, %v38
    %v70 = vadd.f32 %v69, %v39
    %v71 = vadd.f32 %v70, %v40
    %72 = vadd.xlane.f32.xlu0 %v71
    %v73 = vpop.xlane.xlu0 %72
    %v74 = vadd.f32 %v41, %v42
    %v75 = vadd.f32 %v74, %v43
    %v76 = vadd.f32 %v75, %v44
    %77 = vadd.xlane.f32.xlu0 %v76
    %v78 = vpop.xlane.xlu0 %77
    %v79 = vadd.f32 %v45, %v46
    %v80 = vadd.f32 %v79, %v47
    %v81 = vadd.f32 %v80, %v48
    %82 = vadd.xlane.f32.xlu0 %v81
    %v83 = vpop.xlane.xlu0 %82
    %v84 = vadd.f32 %v49, %v50
    %v85 = vadd.f32 %v84, %v51
    %v86 = vadd.f32 %v85, %v52
    %87 = vadd.xlane.f32.xlu0 %v86
    %v88 = vpop.xlane.xlu0 %87
    %v89 = vadd.f32 %v53, %v54
    %v90 = vadd.f32 %v89, %v55
    %v91 = vadd.f32 %v90, %v56
    %92 = vadd.xlane.f32.xlu0 %v91
    %v93 = vpop.xlane.xlu0 %92
    %v94 = vadd.f32 %v57, %v58
    %v95 = vadd.f32 %v94, %v59
    %v96 = vadd.f32 %v95, %v60
    %97 = vadd.xlane.f32.xlu0 %v96
    %v98 = vpop.xlane.xlu0 %97
    %v99 = vadd.f32 %v61, %v62
    %v100 = vadd.f32 %v99, %v63
    %v101 = vadd.f32 %v100, %v64
    %102 = vadd.xlane.f32.xlu0 %v101
    %v103 = vpop.xlane.xlu0 %102
    %v104 = vadd.f32 %v65, %v66
    %v105 = vadd.f32 %v104, %v67
    %v106 = vadd.f32 %v105, %v68
    %107 = vadd.xlane.f32.xlu0 %v106
    %v108 = vpop.xlane.xlu0 %107
    %v109 = vmul.f32 %v73, 0.001953125
    %v110 = vmul.f32 %v78, 0.001953125
    %v111 = vmul.f32 %v83, 0.001953125
    %v112 = vmul.f32 %v88, 0.001953125
    %v113 = vmul.f32 %v93, 0.001953125
    %v114 = vmul.f32 %v98, 0.001953125
    %v115 = vmul.f32 %v103, 0.001953125
    %v116 = vmul.f32 %v108, 0.001953125
    %v117 = vld [vmem:[%s1] sm:$0xff]
    %v118 = vld [vmem:[%s1 + $0x8] sm:$0xff]
    %v119 = vld [vmem:[%s1 + $0x10] sm:$0xff]
    %v120 = vld [vmem:[%s1 + $0x18] sm:$0xff]
    %v121 = vld [vmem:[%s2] sm:$0x1]
    %v123 = vperm.slane %v121, 0
    %v133 = vlaneseq
    %v134 = vand.u32 %v133, 127
    %v135 = vperm.slane %v109, %v134
    %v136 = vadd.s32 %v134, 4294967288
    %v137 = vperm.slane %v110, %v136
    %vm138 = vcmask 130112
    %v139 = vsel %vm138, %v137, %v135
    %v140 = vadd.s32 %v134, 4294967280
    %v141 = vperm.slane %v111, %v140
    %vm142 = vcmask 195712
    %v143 = vsel %vm142, %v141, %v139
    %v144 = vadd.s32 %v134, 4294967272
    %v145 = vperm.slane %v112, %v144
    %vm146 = vcmask 261312
    %v147 = vsel %vm146, %v145, %v143
    %v148 = vperm.slane %v113, %v134
    %v149 = vperm.slane %v114, %v136
    %v150 = vsel %vm138, %v149, %v148
    %v151 = vperm.slane %v115, %v140
    %v152 = vsel %vm142, %v151, %v150
    %v153 = vperm.slane %v116, %v144
    %v154 = vsel %vm146, %v153, %v152
    %vm155 = vcmask 1041409
    %v156 = vsel %vm155, %v154, %v147
    %vm157 = vcmask 261120
    %v158 = vsel %vm157, %v156, 0
    %160 = vmatpush.msra.mxu0 0.0
    %161 = vmatpush.msra.mxu0 0.0
    %162 = vmatpush.msra.mxu0 0.0
    %163 = vmatpush.msra.mxu0 0.0
    %164 = vmatpush.msra.mxu0 0.0
    %165 = vmatpush.msra.mxu0 0.0
    %166 = vmatpush.msra.mxu0 0.0
    %167 = vmatpush.msra.mxu0 0.0
    %168 = vmatpush.msra.mxu0 0.0
    %169 = vmatpush.msra.mxu0 0.0
    %170 = vmatpush.msra.mxu0 0.0
    %171 = vmatpush.msra.mxu0 0.0
    %172 = vmatpush.msra.mxu0 %v120
    %173 = vmatpush.msra.mxu0 %v119
    %174 = vmatpush.msra.mxu0 %v118
    %175 = vmatpush.msra.mxu0 %v117
    %176 = vmatmul.f32.gmra.mxu0 %v158
    %v177 = vpop.f32.mrf.mxu0
    %v178 = vadd.f32 %v123, %v177
    %179 = vdwg.mxu0
    %v180 = vmax.f32 %v178, 0.0
    %v181 = vld [vmem:[%s3] sm:$0xff]
    %v182 = vld [vmem:[%s4] sm:$0x1]
    %v184 = vperm.slane %v182, 0
    %vm186 = vcmask 64512
    %v188 = vsel %vm186, %v180, 0
    %190 = vmatpush.msra.mxu0 0.0
    %191 = vmatpush.msra.mxu0 0.0
    %192 = vmatpush.msra.mxu0 0.0
    %193 = vmatpush.msra.mxu0 0.0
    %194 = vmatpush.msra.mxu0 0.0
    %195 = vmatpush.msra.mxu0 0.0
    %196 = vmatpush.msra.mxu0 0.0
    %197 = vmatpush.msra.mxu0 0.0
    %198 = vmatpush.msra.mxu0 0.0
    %199 = vmatpush.msra.mxu0 0.0
    %200 = vmatpush.msra.mxu0 0.0
    %201 = vmatpush.msra.mxu0 0.0
    %202 = vmatpush.msra.mxu0 0.0
    %203 = vmatpush.msra.mxu0 0.0
    %204 = vmatpush.msra.mxu0 0.0
    %205 = vmatpush.msra.mxu0 %v181
    %206 = vmatmul.f32.gmra.mxu0 %v188
    %v207 = vpop.f32.mrf.mxu0
    %v208 = vadd.f32 %v184, %v207
    %209 = vdwg.mxu0
    %v210 = vxor.u32 %v208, 2147483648
    %v211 = vmul.f32 %v210, 1.442695
    %v212 = vpow.pop %v211
    %v213 = vadd.f32 %v212, 1.0
    %v214 = vrcp.pop %v213
    %v215 = vmul.f32 %v213, %v214
    %v216 = vsub.f32 1.0, %v215
    %v217 = vmul.f32 %v214, %v216
    %v218 = vadd.f32 %v214, %v217
    %vm219 = vweird.f32 %v213
    %vm220 = vweird.f32 %v214
    %vm221 = vmor %vm219, %vm220
    %v222 = vsel %vm221, %v214, %v218
    %v223 = vand.u32 2147483647, %v213
    %vm224 = vcmp.eq.f32.partialorder %v223, 8.507059e+37
    %v225 = vand.u32 %v213, 2147483648
    %v226 = vor.u32 1.1754944e-38, %v225
    %v227 = vsel %vm224, %v226, %v222
    %v228 = vmul.f32 1.0, %v227
    %v229 = vperm.slane %v228, 0
    %v230 = vlaneseq
    %v231 = vshrl.u32 %v230, 7
    %233 = vset.pattern.permute.xlu0 %v231
    %234 = vperm.xlu0 %233, %v229
    %v235 = vpop.permute.xlu0 %234
    %v236 = vlaneseq
    %v237 = vshrl.u32 %v236, 7
    %v238 = vadd.s32 %v237, 8
    %239 = vset.pattern.permute.xlu0 %v238
    %240 = vperm.xlu0 %239, %v229
    %v241 = vpop.permute.xlu0 %240
    %v242 = vlaneseq
    %v243 = vshrl.u32 %v242, 7
    %v244 = vadd.s32 %v243, 16
    %245 = vset.pattern.permute.xlu0 %v244
    %246 = vperm.xlu0 %245, %v229
    %v247 = vpop.permute.xlu0 %246
    %v248 = vlaneseq
    %v249 = vshrl.u32 %v248, 7
    %v250 = vadd.s32 %v249, 24
    %251 = vset.pattern.permute.xlu0 %v250
    %252 = vperm.xlu0 %251, %v229
    %v253 = vpop.permute.xlu0 %252
    %v254 = vperm.slane %v228, 1
    %v255 = vlaneseq
    %v256 = vshrl.u32 %v255, 7
    %258 = vset.pattern.permute.xlu0 %v256
    %259 = vperm.xlu0 %258, %v254
    %v260 = vpop.permute.xlu0 %259
    %v261 = vlaneseq
    %v262 = vshrl.u32 %v261, 7
    %v263 = vadd.s32 %v262, 8
    %264 = vset.pattern.permute.xlu0 %v263
    %265 = vperm.xlu0 %264, %v254
    %v266 = vpop.permute.xlu0 %265
    %v267 = vlaneseq
    %v268 = vshrl.u32 %v267, 7
    %v269 = vadd.s32 %v268, 16
    %270 = vset.pattern.permute.xlu0 %v269
    %271 = vperm.xlu0 %270, %v254
    %v272 = vpop.permute.xlu0 %271
    %v273 = vlaneseq
    %v274 = vshrl.u32 %v273, 7
    %v275 = vadd.s32 %v274, 24
    %276 = vset.pattern.permute.xlu0 %v275
    %277 = vperm.xlu0 %276, %v254
    %v278 = vpop.permute.xlu0 %277
    %v279 = vmul.f32 %v37, %v235
    %v280 = vmul.f32 %v38, %v235
    %v281 = vmul.f32 %v39, %v235
    %v282 = vmul.f32 %v40, %v235
    %v283 = vmul.f32 %v41, %v241
    %v284 = vmul.f32 %v42, %v241
    %v285 = vmul.f32 %v43, %v241
    %v286 = vmul.f32 %v44, %v241
    %v287 = vmul.f32 %v45, %v247
    %v288 = vmul.f32 %v46, %v247
    %v289 = vmul.f32 %v47, %v247
    %v290 = vmul.f32 %v48, %v247
    %v291 = vmul.f32 %v49, %v253
    %v292 = vmul.f32 %v50, %v253
    %v293 = vmul.f32 %v51, %v253
    %v294 = vmul.f32 %v52, %v253
    %v295 = vmul.f32 %v53, %v260
    %v296 = vmul.f32 %v54, %v260
    %v297 = vmul.f32 %v55, %v260
    %v298 = vmul.f32 %v56, %v260
    %v299 = vmul.f32 %v57, %v266
    %v300 = vmul.f32 %v58, %v266
    %v301 = vmul.f32 %v59, %v266
    %v302 = vmul.f32 %v60, %v266
    %v303 = vmul.f32 %v61, %v272
    %v304 = vmul.f32 %v62, %v272
    %v305 = vmul.f32 %v63, %v272
    %v306 = vmul.f32 %v64, %v272
    %v307 = vmul.f32 %v65, %v278
    %v308 = vmul.f32 %v66, %v278
    %v309 = vmul.f32 %v67, %v278
    %v310 = vmul.f32 %v68, %v278
    %311 = vst [vmem:[#allocation5] sm:$0xff] %v279
    %312 = vst [vmem:[#allocation5 + $0x8] sm:$0xff] %v280
    %313 = vst [vmem:[#allocation5 + $0x10] sm:$0xff] %v281
    %314 = vst [vmem:[#allocation5 + $0x18] sm:$0xff] %v282
    %315 = vst [vmem:[#allocation5 + $0x20] sm:$0xff] %v283
    %316 = vst [vmem:[#allocation5 + $0x28] sm:$0xff] %v284
    %317 = vst [vmem:[#allocation5 + $0x30] sm:$0xff] %v285
    %318 = vst [vmem:[#allocation5 + $0x38] sm:$0xff] %v286
    %319 = vst [vmem:[#allocation5 + $0x40] sm:$0xff] %v287
    %320 = vst [vmem:[#allocation5 + $0x48] sm:$0xff] %v288
    %321 = vst [vmem:[#allocation5 + $0x50] sm:$0xff] %v289
    %322 = vst [vmem:[#allocation5 + $0x58] sm:$0xff] %v290
    %323 = vst [vmem:[#allocation5 + $0x60] sm:$0xff] %v291
    %324 = vst [vmem:[#allocation5 + $0x68] sm:$0xff] %v292
    %325 = vst [vmem:[#allocation5 + $0x70] sm:$0xff] %v293
    %326 = vst [vmem:[#allocation5 + $0x78] sm:$0xff] %v294
    %327 = vst [vmem:[#allocation5 + $0x80] sm:$0xff] %v295
    %328 = vst [vmem:[#allocation5 + $0x88] sm:$0xff] %v296
    %329 = vst [vmem:[#allocation5 + $0x90] sm:$0xff] %v297
    %330 = vst [vmem:[#allocation5 + $0x98] sm:$0xff] %v298
    %331 = vst [vmem:[#allocation5 + $0xa0] sm:$0xff] %v299
    %332 = vst [vmem:[#allocation5 + $0xa8] sm:$0xff] %v300
    %333 = vst [vmem:[#allocation5 + $0xb0] sm:$0xff] %v301
    %334 = vst [vmem:[#allocation5 + $0xb8] sm:$0xff] %v302
    %335 = vst [vmem:[#allocation5 + $0xc0] sm:$0xff] %v303
    %336 = vst [vmem:[#allocation5 + $0xc8] sm:$0xff] %v304
    %337 = vst [vmem:[#allocation5 + $0xd0] sm:$0xff] %v305
    %338 = vst [vmem:[#allocation5 + $0xd8] sm:$0xff] %v306
    %339 = vst [vmem:[#allocation5 + $0xe0] sm:$0xff] %v307
    %340 = vst [vmem:[#allocation5 + $0xe8] sm:$0xff] %v308
    %341 = vst [vmem:[#allocation5 + $0xf0] sm:$0xff] %v309
    %342 = vst [vmem:[#allocation5 + $0xf8] sm:$0xff] %v310
    // Predicated region
    $region26: #{tpu_custom_call.1} parent=1 // pred_check
      _
    $region27: #{tpu_custom_call.1} parent=1 // pred_check_branch
      %344 = sbr.rel (0) target = $region29
    $region28: #{tpu_custom_call.1} parent=1 // pred_region
      %346 = vsyncadd [#allocation4], 0
      %s347 = sshll.u32 [#allocation5], 4
      %s348 = int_to_ptr.vmem [resolvable:$true] %s347
      %s349 = sshll.u32 %s5, 4
      %s350 = int_to_ptr.hbm [resolvable:$true] %s349
      %355 = dma.vmem_to_hbm [thread:$0]  %s348, 4096, %s350, [#allocation4], 512, 512, 32
    $region29: #{tpu_custom_call.1} parent=1 // pred_fallthru
      _
    // Predicated region
    $region30: #{tpu_custom_call.1} parent=1 // pred_check
      _
    $region31: #{tpu_custom_call.1} parent=1 // pred_check_branch
      %357 = sbr.rel (0) target = $region33
    $region32: #{tpu_custom_call.1} parent=1 // pred_region
      %359 = dma.done [#allocation4], 4096
    $region33: #{tpu_custom_call.1} parent=1 // pred_fallthru
      _
    %360 = vsyncpa [#allocation3], 1
    %361 = vsyncpa [#allocation4], 1

</llo_original>
